<compile_context>
chip_gen: v6e
topology: v6e:2x2x1
jax: 0.10.0
libtpu: 0.0.40
codegen_flags: <defaults>
</compile_context>

<pallas_src>
import functools

import jax
import jax.numpy as jnp
from jax import lax
from jax.experimental import pallas as pl
from jax.experimental.pallas import tpu as pltpu

LANES = 128
SUBLANE_MULT = 32                       # multiple of f32(8)/bf16(16)/int8(32) reqs
MAX_TILE_ROWS = 4096                    # 2 MiB per f32 stream tile
VMEM_TILE_BUDGET = 16 * 1024 * 1024     # double-buffered tile-data budget
VMEM_LIMIT_BYTES = 32 * 1024 * 1024     # explicit scoped-VMEM request (ok on v5e..v7x)


def _round_up(x, m):
    return ((x + m - 1) // m) * m


@functools.lru_cache(maxsize=1)
def _num_tensorcores():
    """TensorCores per device this kernel may split its grid across.

    v5e / v6e expose a single TensorCore per device; v7x exposes two.
    Detection is best-effort; on failure fall back to 1 (always correct)."""
    try:
        kind = str(jax.devices()[0].device_kind).lower()
    except Exception:
        return 1
    if "v7" in kind or "7x" in kind:
        return 2
    return 1


def _make_kernel(*, has_pad, tile_rows, steps_per_core, total_steps,
                 full_rows, overprovisioned):
    """Builds the accumulation kernel.

    Per-core output slab (n_sums, 8, 128) of per-lane partial sums:
      has_pad=True :  [0] sum(mask * mpad * base)                  (w_in  * base)
                      [1] sum((mask - mask*mpad) * logvar)          (negated later)
                      [2] sum(mpad)
                      [3] sum(trunc(mask))       (== mask.int().sum())
      has_pad=False:  [0] sum(mask * base)
                      [1] sum(trunc(mask))
    where base = exp(-logvar) * |mean - target| + logvar.
    """
    partial_rows = full_rows - (total_steps - 1) * tile_rows  # valid rows, last block
    has_partial = partial_rows != tile_rows
    needs_gate = has_partial or overprovisioned

    def fold(x):
        # (tile_rows, 128) -> (8, 128) with layout-preserving vreg adds only.
        return x.reshape(tile_rows // 8, 8, LANES).sum(axis=0)

    def kernel(mean_ref, logvar_ref, target_ref, mask_ref, *rest):
        if has_pad:
            mpad_ref, out_ref = rest
        else:
            (out_ref,) = rest

        @pl.when(pl.program_id(1) == 0)
        def _init():
            out_ref[...] = jnp.zeros_like(out_ref)

        def accumulate(row_valid):
            mean = mean_ref[...].astype(jnp.float32)
            logvar = logvar_ref[...].astype(jnp.float32)
            target = target_ref[...].astype(jnp.float32)
            mask = mask_ref[...].astype(jnp.float32)

            base = jnp.exp(-logvar) * jnp.abs(mean - target) + logvar

            if has_pad:
                mpad = mpad_ref[...].astype(jnp.float32)
                w_in = mask * mpad
                w_oor = mask - w_in          # == mask * (1 - mpad)
                terms = (w_in * base, w_oor * logvar, mpad, jnp.trunc(mask))
            else:
                terms = (mask * base, jnp.trunc(mask))

            if row_valid is not None:
                # Zero rows past the real data; where() also kills any NaN/Inf
                # produced from the partial block's garbage padding.
                terms = tuple(jnp.where(row_valid, t, 0.0) for t in terms)

            for idx, t in enumerate(terms):
                out_ref[0, idx] += fold(t)

        if not needs_gate:
            accumulate(None)
        else:
            g = pl.program_id(0) * steps_per_core + pl.program_id(1)
            last_full = total_steps - 1 if has_partial else total_steps

            @pl.when(g < last_full)
            def _full_blocks():                       # unmasked fast path
                accumulate(None)

            if has_partial:
                @pl.when(g == total_steps - 1)
                def _tail_block():                    # only this tile pays for masking
                    rids = lax.broadcasted_iota(jnp.int32, (tile_rows, LANES), 0)
                    accumulate(rids < partial_rows)
            # g >= total_steps (over-provisioned clamped re-read): no compute.

    return kernel


def _flatten_stream(x, ref_shape):
    x = jnp.asarray(x)
    if x.shape != ref_shape:
        x = jnp.broadcast_to(x, ref_shape)
    return x.reshape(-1)


def improved_uncertainty_l1_loss(inputs, target, mask, mask_padding=None):
    """JAX/Pallas equivalent of ImprovedUncertaintyL1Loss.forward.

    inputs: dict with 'mean' and 'logvar'; returns a scalar float32 loss.
    """
    def as_float(x):
        x = jnp.asarray(x)
        if not jnp.issubdtype(x.dtype, jnp.floating):
            x = x.astype(jnp.float32)
        return x

    def as_mask(x):
        x = jnp.asarray(x)
        if x.dtype == jnp.bool_:
            x = x.astype(jnp.int8)     # 1 B/elem HBM stream; cast to f32 on the VPU
        return x

    mean = as_float(inputs["mean"])
    logvar = as_float(inputs["logvar"])
    target = as_float(target)
    mask = as_mask(mask)
    has_pad = mask_padding is not None
    mpad = as_mask(mask_padding) if has_pad else None

    shape = mean.shape
    streams = [mean, logvar, target, mask] + ([mpad] if has_pad else [])
    flats = [_flatten_stream(s, shape) for s in streams]

    numel = int(flats[0].shape[0])
    full_rows = numel // LANES
    rem = numel - full_rows * LANES
    n_sums = 4 if has_pad else 2

    sums = jnp.zeros((n_sums,), jnp.float32)

    if full_rows > 0:
        # -------- lane-dense prefix processed by the Pallas kernel ----------
        n_pref = full_rows * LANES
        slabs = [(f if rem == 0 else f[:n_pref]).reshape(full_rows, LANES)
                 for f in flats]

        # Tile size from the double-buffered VMEM budget; rows satisfy the
        # strictest sublane-tiling requirement of the streamed dtypes.
        min_itemsize = min(s.dtype.itemsize for s in slabs)
        sublane_req = {4: 8, 2: 16, 1: 32}.get(min_itemsize, 32)
        bytes_per_row = 2 * LANES * sum(s.dtype.itemsize for s in slabs)
        max_tile = (VMEM_TILE_BUDGET // bytes_per_row) // SUBLANE_MULT * SUBLANE_MULT
        max_tile = max(SUBLANE_MULT, min(MAX_TILE_ROWS, max_tile))
        tile_rows = min(max_tile, _round_up(full_rows, sublane_req))

        total_steps = pl.cdiv(full_rows, tile_rows)
        num_cores = max(1, min(_num_tensorcores(), total_steps))
        steps_per_core = pl.cdiv(total_steps, num_cores)
        overprov = num_cores * steps_per_core != total_steps

        def in_index_map(c, i):
            # Clamp: over-provisioned steps re-read the last block; their
            # compute is skipped in-kernel.
            return (jnp.minimum(c * steps_per_core + i, total_steps - 1), 0)

        in_spec = pl.BlockSpec((tile_rows, LANES), in_index_map)
        out_spec = pl.BlockSpec((1, n_sums, 8, LANES), lambda c, i: (c, 0, 0, 0))

        if num_cores > 1:
            dims = (getattr(pltpu, "CORE_PARALLEL", "parallel"),
                    getattr(pltpu, "ARBITRARY", "arbitrary"))
        else:
            dims = ("arbitrary", "arbitrary")

        kernel = _make_kernel(
            has_pad=has_pad,
            tile_rows=tile_rows,
            steps_per_core=steps_per_core,
            total_steps=total_steps,
            full_rows=full_rows,
            overprovisioned=overprov,
        )

        bytes_accessed = sum(int(s.size) * s.dtype.itemsize for s in slabs)
        cost = pl.CostEstimate(
            flops=(10 if has_pad else 7) * full_rows * LANES,
            transcendentals=full_rows * LANES,
            bytes_accessed=bytes_accessed + num_cores * n_sums * 8 * LANES * 4,
        )

        partials = pl.pallas_call(
            kernel,
            out_shape=jax.ShapeDtypeStruct((num_cores, n_sums, 8, LANES), jnp.float32),
            grid=(num_cores, steps_per_core),
            in_specs=[in_spec] * len(slabs),
            out_specs=out_spec,
            compiler_params=pltpu.CompilerParams(
                dimension_semantics=dims,
                vmem_limit_bytes=VMEM_LIMIT_BYTES,
            ),
            cost_estimate=cost,
        )(*slabs)

        sums = sums + jnp.sum(partials, axis=(0, 2, 3))

    if rem > 0:
        # -------- <128-element ragged tail folded in with plain JAX ---------
        off = full_rows * LANES
        t_mean, t_logvar, t_target, t_mask = (
            f[off:].astype(jnp.float32) for f in flats[:4])
        base_t = jnp.exp(-t_logvar) * jnp.abs(t_mean - t_target) + t_logvar
        if has_pad:
            t_mpad = flats[4][off:].astype(jnp.float32)
            w_in = t_mask * t_mpad
            w_oor = t_mask - w_in
            tail = jnp.stack([jnp.sum(w_in * base_t), jnp.sum(w_oor * t_logvar),
                              jnp.sum(t_mpad), jnp.sum(jnp.trunc(t_mask))])
        else:
            tail = jnp.stack([jnp.sum(t_mask * base_t), jnp.sum(jnp.trunc(t_mask))])
        sums = sums + tail

    # -------- scalar epilogue (matches the torch forward exactly) -----------
    n = jnp.float32(numel)
    if has_pad:
        s_in, s_oor_pos, sum_mp, count = sums[0], sums[1], sums[2], sums[3]
        s_oor = -s_oor_pos                       # sum(mask * (1 - mpad) * (-logvar))
        sum_oor_w = n - sum_mp                   # sum(1 - mpad)
        scale_in = jnp.where(sum_mp > 0, n / jnp.where(sum_mp > 0, sum_mp, 1.0), 1.0)
        scale_oor = jnp.where(sum_oor_w > 0,
                              n / jnp.where(sum_oor_w > 0, sum_oor_w, 1.0), 1.0)
        total = 0.5 * (s_in * scale_in + s_oor * scale_oor)
    else:
        total, count = sums[0], sums[1]

    return jnp.where(count == 0, total, total / jnp.where(count == 0, 1.0, count))


def _reference(inputs, target, mask, mask_padding=None):
    """Pure-jnp transcription of the PyTorch forward for verification."""
    mean = jnp.asarray(inputs["mean"], jnp.float32)
    logvar = jnp.asarray(inputs["logvar"], jnp.float32)
    target = jnp.asarray(target, jnp.float32)
    loss = jnp.exp(-logvar) * jnp.abs(mean - target) + logvar
    if mask_padding is not None:
        mp = jnp.asarray(mask_padding).astype(jnp.float32)
        n = jnp.float32(mp.size)
        loss = loss * mp
        smp = jnp.sum(mp)
        loss = jnp.where(smp > 0, loss * (n / jnp.where(smp > 0, smp, 1.0)), loss)
        moor = 1.0 - mp
        loss_oor = -logvar * moor
        soor = jnp.sum(moor)
        loss_oor = jnp.where(
            soor > 0, loss_oor * (n / jnp.where(soor > 0, soor, 1.0)), loss_oor)
        loss = (loss + loss_oor) / 2.0
    maskf = jnp.asarray(mask).astype(jnp.float32)
    count = jnp.sum(jnp.trunc(maskf))
    total = jnp.sum(loss * maskf)
    return jnp.where(count == 0, total, total / jnp.where(count == 0, 1.0, count))


if __name__ == "__main__":
    key = jax.random.PRNGKey(0)

    def make_case(case_key, shape, bool_masks=False):
        k1, k2, k3, k4, k5 = jax.random.split(case_key, 5)
        mean = jax.random.normal(k1, shape, jnp.float32)
        logvar = 0.5 * jax.random.normal(k2, shape, jnp.float32)
        tgt = jax.random.normal(k3, shape, jnp.float32)
        msk = jax.random.uniform(k4, shape) > 0.3
        mpd = jax.random.uniform(k5, shape) > 0.2
        if not bool_masks:
            msk = msk.astype(jnp.float32)
            mpd = mpd.astype(jnp.float32)
        return {"mean": mean, "logvar": logvar}, tgt, msk, mpd

    # (shape, use mask_padding, bool masks -> int8 streaming)
    cases = [
        ((2, 4, 16, 16), True, False),    # aligned single block, padded path
        ((2, 4, 16, 16), False, False),   # mask_padding=None (4-stream kernel)
        ((2, 3, 7, 11), True, False),     # ragged 462-elem: kernel prefix + JAX tail
        ((1, 1, 5, 7), True, False),      # < 128 elems: pure-JAX tail path
        ((4, 8, 128, 128), True, True),   # large aligned, bool->int8 mask streaming
        ((4, 8, 128, 128), False, True),  # large aligned, no padding, bool mask
        ((3, 5, 100, 131), True, False),  # multi-row ragged: partial block + JAX tail
    ]

    keys = jax.random.split(key, len(cases))
    for ck, (shape, use_pad, bool_masks) in zip(keys, cases):
        inputs, tgt, msk, mpd = make_case(ck, shape, bool_masks)
        mp = mpd if use_pad else None
        out = jax.block_until_ready(improved_uncertainty_l1_loss(inputs, tgt, msk, mp))
        ref = jax.block_until_ready(_reference(inputs, tgt, msk, mp))
        assert jnp.allclose(out, ref, rtol=1e-4, atol=1e-4), (
            shape, use_pad, bool_masks, float(out), float(ref))

    print("KERNEL_OK")
</pallas_src>

<mosaic_0001>
module attributes {stable_mosaic.version = 11 : i64} {
  func.func @kernel(%arg0: i32, %arg1: i32, %arg2: memref<16x128xf32, #tpu.memory_space<vmem>>, %arg3: memref<16x128xf32, #tpu.memory_space<vmem>>, %arg4: memref<16x128xf32, #tpu.memory_space<vmem>>, %arg5: memref<16x128xf32, #tpu.memory_space<vmem>>, %arg6: memref<16x128xf32, #tpu.memory_space<vmem>>, %arg7: memref<1x4x8x128xf32, #tpu.memory_space<vmem>>) attributes {dimension_semantics = [#tpu.dimension_semantics<arbitrary>, #tpu.dimension_semantics<arbitrary>], iteration_bounds = array<i64: 1, 1>, scalar_prefetch = 0 : i64, scratch_operands = 0 : i64, tpu.core_type = #tpu.core_type<tc>, window_params = [{transform_indices = @transform_0, window_bounds = array<i64: 16, 128>}, {transform_indices = @transform_1, window_bounds = array<i64: 16, 128>}, {transform_indices = @transform_2, window_bounds = array<i64: 16, 128>}, {transform_indices = @transform_3, window_bounds = array<i64: 16, 128>}, {transform_indices = @transform_4, window_bounds = array<i64: 16, 128>}, {transform_indices = @transform_5, window_bounds = array<i64: 1, 4, 8, 128>}]} {
    %c0_i32 = arith.constant 0 : i32
    %0 = arith.cmpi eq, %arg1, %c0_i32 : i32
    %1 = arith.extui %0 : i1 to i32
    %c0_i32_0 = arith.constant 0 : i32
    %2 = arith.cmpi ne, %1, %c0_i32_0 : i32
    scf.if %2 {
      %cst_44 = arith.constant 0.000000e+00 : f32
      %56 = vector.broadcast %cst_44 : f32 to vector<1x4x8x128xf32>
      %c0_45 = arith.constant 0 : index
      %c0_46 = arith.constant 0 : index
      %c0_47 = arith.constant 0 : index
      %c0_48 = arith.constant 0 : index
      %57 = vector.load %arg7[%c0_45, %c0_46, %c0_47, %c0_48] : memref<1x4x8x128xf32, #tpu.memory_space<vmem>>, vector<1x4x8x128xf32>
      tpu.vector_store %arg7[%c0_45, %c0_46, %c0_47, %c0_48], %56 {strides = array<i32>} : memref<1x4x8x128xf32, #tpu.memory_space<vmem>>, vector<1x4x8x128xf32>,
    } else {
    }
    %c0 = arith.constant 0 : index
    %c0_1 = arith.constant 0 : index
    %3 = vector.load %arg2[%c0, %c0_1] : memref<16x128xf32, #tpu.memory_space<vmem>>, vector<16x128xf32>
    %c0_2 = arith.constant 0 : index
    %c0_3 = arith.constant 0 : index
    %4 = vector.load %arg3[%c0_2, %c0_3] : memref<16x128xf32, #tpu.memory_space<vmem>>, vector<16x128xf32>
    %c0_4 = arith.constant 0 : index
    %c0_5 = arith.constant 0 : index
    %5 = vector.load %arg4[%c0_4, %c0_5] : memref<16x128xf32, #tpu.memory_space<vmem>>, vector<16x128xf32>
    %c0_6 = arith.constant 0 : index
    %c0_7 = arith.constant 0 : index
    %6 = vector.load %arg5[%c0_6, %c0_7] : memref<16x128xf32, #tpu.memory_space<vmem>>, vector<16x128xf32>
    %cst = arith.constant 0.000000e+00 : f32
    %7 = vector.broadcast %cst : f32 to vector<16x128xf32>
    %8 = arith.subf %7, %4 : vector<16x128xf32>
    %9 = math.exp %8 : vector<16x128xf32>
    %10 = arith.subf %3, %5 : vector<16x128xf32>
    %11 = math.absf %10 : vector<16x128xf32>
    %12 = arith.mulf %9, %11 : vector<16x128xf32>
    %13 = arith.addf %12, %4 : vector<16x128xf32>
    %c0_8 = arith.constant 0 : index
    %c0_9 = arith.constant 0 : index
    %14 = vector.load %arg6[%c0_8, %c0_9] : memref<16x128xf32, #tpu.memory_space<vmem>>, vector<16x128xf32>
    %15 = arith.mulf %6, %14 : vector<16x128xf32>
    %16 = arith.subf %6, %15 : vector<16x128xf32>
    %17 = arith.mulf %15, %13 : vector<16x128xf32>
    %18 = arith.mulf %16, %4 : vector<16x128xf32>
    %cst_10 = arith.constant 0.000000e+00 : f32
    %19 = vector.broadcast %cst_10 : f32 to vector<16x128xf32>
    %20 = arith.cmpf olt, %6, %19 : vector<16x128xf32>
    %21 = math.ceil %6 : vector<16x128xf32>
    %22 = math.floor %6 : vector<16x128xf32>
    %23 = arith.select %20, %21, %22 : vector<16x128xi1>, vector<16x128xf32>
    %c0_11 = arith.constant 0 : index
    %c0_12 = arith.constant 0 : index
    %c0_13 = arith.constant 0 : index
    %c0_14 = arith.constant 0 : index
    %24 = vector.load %arg7[%c0_11, %c0_12, %c0_13, %c0_14] : memref<1x4x8x128xf32, #tpu.memory_space<vmem>>, vector<1x1x8x128xf32>
    %25 = vector.shape_cast %24 : vector<1x1x8x128xf32> to vector<8x128xf32>
    %26 = vector.shape_cast %17 : vector<16x128xf32> to vector<2x8x128xf32>
    %cst_15 = arith.constant dense<0.000000e+00> : vector<8x128xf32>
    %27 = vector.multi_reduction <add>, %26, %cst_15 [0] : vector<2x8x128xf32> to vector<8x128xf32>
    %28 = arith.addf %25, %27 : vector<8x128xf32>
    %c0_16 = arith.constant 0 : index
    %c0_17 = arith.constant 0 : index
    %c0_18 = arith.constant 0 : index
    %c0_19 = arith.constant 0 : index
    %29 = vector.load %arg7[%c0_16, %c0_17, %c0_18, %c0_19] : memref<1x4x8x128xf32, #tpu.memory_space<vmem>>, vector<1x1x8x128xf32>
    %30 = vector.shape_cast %29 : vector<1x1x8x128xf32> to vector<8x128xf32>
    %31 = vector.shape_cast %28 : vector<8x128xf32> to vector<1x1x8x128xf32>
    tpu.vector_store %arg7[%c0_16, %c0_17, %c0_18, %c0_19], %31 {strides = array<i32>} : memref<1x4x8x128xf32, #tpu.memory_space<vmem>>, vector<1x1x8x128xf32>,
    %c0_20 = arith.constant 0 : index
    %c1 = arith.constant 1 : index
    %c0_21 = arith.constant 0 : index
    %c0_22 = arith.constant 0 : index
    %32 = vector.load %arg7[%c0_20, %c1, %c0_21, %c0_22] : memref<1x4x8x128xf32, #tpu.memory_space<vmem>>, vector<1x1x8x128xf32>
    %33 = vector.shape_cast %32 : vector<1x1x8x128xf32> to vector<8x128xf32>
    %34 = vector.shape_cast %18 : vector<16x128xf32> to vector<2x8x128xf32>
    %cst_23 = arith.constant dense<0.000000e+00> : vector<8x128xf32>
    %35 = vector.multi_reduction <add>, %34, %cst_23 [0] : vector<2x8x128xf32> to vector<8x128xf32>
    %36 = arith.addf %33, %35 : vector<8x128xf32>
    %c0_24 = arith.constant 0 : index
    %c1_25 = arith.constant 1 : index
    %c0_26 = arith.constant 0 : index
    %c0_27 = arith.constant 0 : index
    %37 = vector.load %arg7[%c0_24, %c1_25, %c0_26, %c0_27] : memref<1x4x8x128xf32, #tpu.memory_space<vmem>>, vector<1x1x8x128xf32>
    %38 = vector.shape_cast %37 : vector<1x1x8x128xf32> to vector<8x128xf32>
    %39 = vector.shape_cast %36 : vector<8x128xf32> to vector<1x1x8x128xf32>
    tpu.vector_store %arg7[%c0_24, %c1_25, %c0_26, %c0_27], %39 {strides = array<i32>} : memref<1x4x8x128xf32, #tpu.memory_space<vmem>>, vector<1x1x8x128xf32>,
    %c0_28 = arith.constant 0 : index
    %c2 = arith.constant 2 : index
    %c0_29 = arith.constant 0 : index
    %c0_30 = arith.constant 0 : index
    %40 = vector.load %arg7[%c0_28, %c2, %c0_29, %c0_30] : memref<1x4x8x128xf32, #tpu.memory_space<vmem>>, vector<1x1x8x128xf32>
    %41 = vector.shape_cast %40 : vector<1x1x8x128xf32> to vector<8x128xf32>
    %42 = vector.shape_cast %14 : vector<16x128xf32> to vector<2x8x128xf32>
    %cst_31 = arith.constant dense<0.000000e+00> : vector<8x128xf32>
    %43 = vector.multi_reduction <add>, %42, %cst_31 [0] : vector<2x8x128xf32> to vector<8x128xf32>
    %44 = arith.addf %41, %43 : vector<8x128xf32>
    %c0_32 = arith.constant 0 : index
    %c2_33 = arith.constant 2 : index
    %c0_34 = arith.constant 0 : index
    %c0_35 = arith.constant 0 : index
    %45 = vector.load %arg7[%c0_32, %c2_33, %c0_34, %c0_35] : memref<1x4x8x128xf32, #tpu.memory_space<vmem>>, vector<1x1x8x128xf32>
    %46 = vector.shape_cast %45 : vector<1x1x8x128xf32> to vector<8x128xf32>
    %47 = vector.shape_cast %44 : vector<8x128xf32> to vector<1x1x8x128xf32>
    tpu.vector_store %arg7[%c0_32, %c2_33, %c0_34, %c0_35], %47 {strides = array<i32>} : memref<1x4x8x128xf32, #tpu.memory_space<vmem>>, vector<1x1x8x128xf32>,
    %c0_36 = arith.constant 0 : index
    %c3 = arith.constant 3 : index
    %c0_37 = arith.constant 0 : index
    %c0_38 = arith.constant 0 : index
    %48 = vector.load %arg7[%c0_36, %c3, %c0_37, %c0_38] : memref<1x4x8x128xf32, #tpu.memory_space<vmem>>, vector<1x1x8x128xf32>
    %49 = vector.shape_cast %48 : vector<1x1x8x128xf32> to vector<8x128xf32>
    %50 = vector.shape_cast %23 : vector<16x128xf32> to vector<2x8x128xf32>
    %cst_39 = arith.constant dense<0.000000e+00> : vector<8x128xf32>
    %51 = vector.multi_reduction <add>, %50, %cst_39 [0] : vector<2x8x128xf32> to vector<8x128xf32>
    %52 = arith.addf %49, %51 : vector<8x128xf32>
    %c0_40 = arith.constant 0 : index
    %c3_41 = arith.constant 3 : index
    %c0_42 = arith.constant 0 : index
    %c0_43 = arith.constant 0 : index
    %53 = vector.load %arg7[%c0_40, %c3_41, %c0_42, %c0_43] : memref<1x4x8x128xf32, #tpu.memory_space<vmem>>, vector<1x1x8x128xf32>
    %54 = vector.shape_cast %53 : vector<1x1x8x128xf32> to vector<8x128xf32>
    %55 = vector.shape_cast %52 : vector<8x128xf32> to vector<1x1x8x128xf32>
    tpu.vector_store %arg7[%c0_40, %c3_41, %c0_42, %c0_43], %55 {strides = array<i32>} : memref<1x4x8x128xf32, #tpu.memory_space<vmem>>, vector<1x1x8x128xf32>,
    return
  }
  func.func @transform_0(%arg0: i32, %arg1: i32) -> (i32, i32) {
    %c1_i32 = arith.constant 1 : i32
    %0 = arith.muli %arg0, %c1_i32 : i32
    %1 = arith.addi %0, %arg1 : i32
    %c0_i32 = arith.constant 0 : i32
    %2 = arith.minsi %1, %c0_i32 : i32
    %c0_i32_0 = arith.constant 0 : i32
    %c0_i32_1 = arith.constant 0 : i32
    return %2, %c0_i32_0 : i32, i32
  }
  func.func @transform_1(%arg0: i32, %arg1: i32) -> (i32, i32) {
    %c1_i32 = arith.constant 1 : i32
    %0 = arith.muli %arg0, %c1_i32 : i32
    %1 = arith.addi %0, %arg1 : i32
    %c0_i32 = arith.constant 0 : i32
    %2 = arith.minsi %1, %c0_i32 : i32
    %c0_i32_0 = arith.constant 0 : i32
    %c0_i32_1 = arith.constant 0 : i32
    return %2, %c0_i32_0 : i32, i32
  }
  func.func @transform_2(%arg0: i32, %arg1: i32) -> (i32, i32) {
    %c1_i32 = arith.constant 1 : i32
    %0 = arith.muli %arg0, %c1_i32 : i32
    %1 = arith.addi %0, %arg1 : i32
    %c0_i32 = arith.constant 0 : i32
    %2 = arith.minsi %1, %c0_i32 : i32
    %c0_i32_0 = arith.constant 0 : i32
    %c0_i32_1 = arith.constant 0 : i32
    return %2, %c0_i32_0 : i32, i32
  }
  func.func @transform_3(%arg0: i32, %arg1: i32) -> (i32, i32) {
    %c1_i32 = arith.constant 1 : i32
    %0 = arith.muli %arg0, %c1_i32 : i32
    %1 = arith.addi %0, %arg1 : i32
    %c0_i32 = arith.constant 0 : i32
    %2 = arith.minsi %1, %c0_i32 : i32
    %c0_i32_0 = arith.constant 0 : i32
    %c0_i32_1 = arith.constant 0 : i32
    return %2, %c0_i32_0 : i32, i32
  }
  func.func @transform_4(%arg0: i32, %arg1: i32) -> (i32, i32) {
    %c1_i32 = arith.constant 1 : i32
    %0 = arith.muli %arg0, %c1_i32 : i32
    %1 = arith.addi %0, %arg1 : i32
    %c0_i32 = arith.constant 0 : i32
    %2 = arith.minsi %1, %c0_i32 : i32
    %c0_i32_0 = arith.constant 0 : i32
    %c0_i32_1 = arith.constant 0 : i32
    return %2, %c0_i32_0 : i32, i32
  }
  func.func @transform_5(%arg0: i32, %arg1: i32) -> (i32, i32, i32, i32) {
    %c0_i32 = arith.constant 0 : i32
    %c0_i32_0 = arith.constant 0 : i32
    %c0_i32_1 = arith.constant 0 : i32
    %c0_i32_2 = arith.constant 0 : i32
    return %arg0, %c0_i32, %c0_i32_0, %c0_i32_1 : i32, i32, i32, i32
  }
}

</mosaic_0001>

<llo_original>
// kernel: tpu_custom_call.1
$region0: #{tpu_custom_call.1}
  #allocation0 [shape = 'u32[]', space=smem, size = 0x4, offset = 0x4, fixed_abs, tag = 'smem constant byte address 0x4 - core index']
  #allocation1 [shape = 'u32[144,128]{1,0:T(1,128)}', space=vmem, size = 0x12000, scoped, tag = 'internal scratch']
  %s0 = inlined_call_operand.hbm [shape: f32[16,128], index: 0, kind: input, shape index: {}]
  %s1 = inlined_call_operand.hbm [shape: f32[16,128], index: 1, kind: input, shape index: {}]
  %s2 = inlined_call_operand.hbm [shape: f32[16,128], index: 2, kind: input, shape index: {}]
  %s3 = inlined_call_operand.hbm [shape: f32[16,128], index: 3, kind: input, shape index: {}]
  %s4 = inlined_call_operand.hbm [shape: f32[16,128], index: 4, kind: input, shape index: {}]
  %s5 = inlined_call_operand.hbm [shape: f32[1,4,8,128], index: 5, kind: output, shape index: {}]
  %s6 = sld [smem:[#allocation0]]
  $region54: #{tpu_custom_call.1} parent=0
    _
  %s8 = ssub.s32 1, %s6
  %s9 = scalar_select 0, %s8, %s6
  $region1: #{tpu_custom_call.1} parent=0
    #allocation2 [shape = 'u8[8192]{0}', space=vmem, size = 0x2000, scoped, tag = 'input window, operand 0, single buffered']
    #allocation3 [shape = 's32[1]{0}', space=sflag, size = 0x4, scoped, tag = 'scoped memory for tpu_custom_call.1']
    #allocation4 [shape = 's32[1]{0}', space=sflag, size = 0x4, scoped, tag = 'scoped memory for tpu_custom_call.1']
    #allocation5 [shape = 'u8[8192]{0}', space=vmem, size = 0x2000, scoped, tag = 'input window, operand 1, single buffered']
    #allocation6 [shape = 's32[1]{0}', space=sflag, size = 0x4, scoped, tag = 'scoped memory for tpu_custom_call.1']
    #allocation7 [shape = 'u8[8192]{0}', space=vmem, size = 0x2000, scoped, tag = 'input window, operand 2, single buffered']
    #allocation8 [shape = 'u8[8192]{0}', space=vmem, size = 0x2000, scoped, tag = 'input window, operand 3, single buffered']
    #allocation9 [shape = 's32[1]{0}', space=sflag, size = 0x4, scoped, tag = 'scoped memory for tpu_custom_call.1']
    #allocation10 [shape = 'u8[8192]{0}', space=vmem, size = 0x2000, scoped, tag = 'input window, operand 4, single buffered']
    #allocation11 [shape = 'u8[16384]{0}', space=vmem, size = 0x4000, scoped, tag = 'output window, operand 0, single buffered']
    %10 = vsyncpa [#allocation3], 0
    %11 = vsyncpa [#allocation6], 0
    %12 = vsyncpa [#allocation9], 0
    %13 = vsyncpa [#allocation4], 0
    // Predicated region
    $region2: #{tpu_custom_call.1} parent=1 // pred_check
      _
    $region3: #{tpu_custom_call.1} parent=1 // pred_check_branch
      %15 = sbr.rel (0) target = $region5
    $region4: #{tpu_custom_call.1} parent=1 // pred_region
      %s16 = sadd.s32 0, 0
      %p17 = scmp.lt.s32.totalorder %s16, 0
      %s18 = scalar_select %p17, %s16, 0
      %s19 = smul.u32 2, %s18
      %s21 = ssub.s32 256, 256
      %22 = vsyncadd [#allocation3], %s21
      %s23 = smul.addr %s19, 128
      %s24 = scalar_lea.hbm %s0, %s23
      %s25 = sshll.u32 [#allocation2], 4
      %s26 = int_to_ptr.vmem [resolvable:$true] %s25
      %31 = dma.hbm_to_vmem [thread:$0]  %s24, 256, %s26, [#allocation3], 128, 128, 8
    $region5: #{tpu_custom_call.1} parent=1 // pred_fallthru
      _
    // Predicated region
    $region6: #{tpu_custom_call.1} parent=1 // pred_check
      _
    $region7: #{tpu_custom_call.1} parent=1 // pred_check_branch
      %33 = sbr.rel (0) target = $region9
    $region8: #{tpu_custom_call.1} parent=1 // pred_region
      %s34 = sadd.s32 0, 0
      %p35 = scmp.lt.s32.totalorder %s34, 0
      %s36 = scalar_select %p35, %s34, 0
      %s37 = smul.u32 2, %s36
      %s39 = ssub.s32 256, 256
      %40 = vsyncadd [#allocation6], %s39
      %s41 = smul.addr %s37, 128
      %s42 = scalar_lea.hbm %s1, %s41
      %s43 = sshll.u32 [#allocation5], 4
      %s44 = int_to_ptr.vmem [resolvable:$true] %s43
      %49 = dma.hbm_to_vmem [thread:$0]  %s42, 256, %s44, [#allocation6], 128, 128, 8
    $region9: #{tpu_custom_call.1} parent=1 // pred_fallthru
      _
    // Predicated region
    $region10: #{tpu_custom_call.1} parent=1 // pred_check
      _
    $region11: #{tpu_custom_call.1} parent=1 // pred_check_branch
      %51 = sbr.rel (0) target = $region13
    $region12: #{tpu_custom_call.1} parent=1 // pred_region
      %s52 = sadd.s32 0, 0
      %p53 = scmp.lt.s32.totalorder %s52, 0
      %s54 = scalar_select %p53, %s52, 0
      %s55 = smul.u32 2, %s54
      %s57 = ssub.s32 256, 256
      %58 = vsyncadd [#allocation6], %s57
      %s59 = smul.addr %s55, 128
      %s60 = scalar_lea.hbm %s2, %s59
      %s61 = sshll.u32 [#allocation7], 4
      %s62 = int_to_ptr.vmem [resolvable:$true] %s61
      %67 = dma.hbm_to_vmem [thread:$0]  %s60, 256, %s62, [#allocation6], 128, 128, 8
    $region13: #{tpu_custom_call.1} parent=1 // pred_fallthru
      _
    // Predicated region
    $region14: #{tpu_custom_call.1} parent=1 // pred_check
      _
    $region15: #{tpu_custom_call.1} parent=1 // pred_check_branch
      %69 = sbr.rel (0) target = $region17
    $region16: #{tpu_custom_call.1} parent=1 // pred_region
      %s70 = sadd.s32 0, 0
      %p71 = scmp.lt.s32.totalorder %s70, 0
      %s72 = scalar_select %p71, %s70, 0
      %s73 = smul.u32 2, %s72
      %s75 = ssub.s32 256, 256
      %76 = vsyncadd [#allocation9], %s75
      %s77 = smul.addr %s73, 128
      %s78 = scalar_lea.hbm %s3, %s77
      %s79 = sshll.u32 [#allocation8], 4
      %s80 = int_to_ptr.vmem [resolvable:$true] %s79
      %85 = dma.hbm_to_vmem [thread:$0]  %s78, 256, %s80, [#allocation9], 128, 128, 8
    $region17: #{tpu_custom_call.1} parent=1 // pred_fallthru
      _
    // Predicated region
    $region18: #{tpu_custom_call.1} parent=1 // pred_check
      _
    $region19: #{tpu_custom_call.1} parent=1 // pred_check_branch
      %87 = sbr.rel (0) target = $region21
    $region20: #{tpu_custom_call.1} parent=1 // pred_region
      %s88 = sadd.s32 0, 0
      %p89 = scmp.lt.s32.totalorder %s88, 0
      %s90 = scalar_select %p89, %s88, 0
      %s91 = smul.u32 2, %s90
      %s93 = ssub.s32 256, 256
      %94 = vsyncadd [#allocation9], %s93
      %s95 = smul.addr %s91, 128
      %s96 = scalar_lea.hbm %s4, %s95
      %s97 = sshll.u32 [#allocation10], 4
      %s98 = int_to_ptr.vmem [resolvable:$true] %s97
      %103 = dma.hbm_to_vmem [thread:$0]  %s96, 256, %s98, [#allocation9], 128, 128, 8
    $region21: #{tpu_custom_call.1} parent=1 // pred_fallthru
      _
    // Predicated region
    $region22: #{tpu_custom_call.1} parent=1 // pred_check
      _
    $region23: #{tpu_custom_call.1} parent=1 // pred_check_branch
      %105 = sbr.rel (0) target = $region25
    $region24: #{tpu_custom_call.1} parent=1 // pred_region
      %106 = dma.done [#allocation3], 256
    $region25: #{tpu_custom_call.1} parent=1 // pred_fallthru
      _
    // Predicated region
    $region26: #{tpu_custom_call.1} parent=1 // pred_check
      _
    $region27: #{tpu_custom_call.1} parent=1 // pred_check_branch
      %108 = sbr.rel (0) target = $region29
    $region28: #{tpu_custom_call.1} parent=1 // pred_region
      %109 = dma.done [#allocation6], 256
    $region29: #{tpu_custom_call.1} parent=1 // pred_fallthru
      _
    // Predicated region
    $region30: #{tpu_custom_call.1} parent=1 // pred_check
      _
    $region31: #{tpu_custom_call.1} parent=1 // pred_check_branch
      %111 = sbr.rel (0) target = $region33
    $region32: #{tpu_custom_call.1} parent=1 // pred_region
      %112 = dma.done [#allocation6], 256
    $region33: #{tpu_custom_call.1} parent=1 // pred_fallthru
      _
    // Predicated region
    $region34: #{tpu_custom_call.1} parent=1 // pred_check
      _
    $region35: #{tpu_custom_call.1} parent=1 // pred_check_branch
      %114 = sbr.rel (0) target = $region37
    $region36: #{tpu_custom_call.1} parent=1 // pred_region
      %115 = dma.done [#allocation9], 256
    $region37: #{tpu_custom_call.1} parent=1 // pred_fallthru
      _
    // Predicated region
    $region38: #{tpu_custom_call.1} parent=1 // pred_check
      _
    $region39: #{tpu_custom_call.1} parent=1 // pred_check_branch
      %117 = sbr.rel (0) target = $region41
    $region40: #{tpu_custom_call.1} parent=1 // pred_region
      %118 = dma.done [#allocation9], 256
    $region41: #{tpu_custom_call.1} parent=1 // pred_fallthru
      _
    %s119 = sadd.s32 0, 0
    %p120 = scmp.lt.s32.totalorder %s119, 0
    %s121 = scalar_select %p120, %s119, 0
    %s122 = smul.u32 2, %s121
    %s123 = sadd.s32 0, 0
    %p124 = scmp.lt.s32.totalorder %s123, 0
    %s125 = scalar_select %p124, %s123, 0
    %s126 = smul.u32 2, %s125
    %s127 = sadd.s32 0, 0
    %p128 = scmp.lt.s32.totalorder %s127, 0
    %s129 = scalar_select %p128, %s127, 0
    %s130 = smul.u32 2, %s129
    %s131 = sadd.s32 0, 0
    %p132 = scmp.lt.s32.totalorder %s131, 0
    %s133 = scalar_select %p132, %s131, 0
    %s134 = smul.u32 2, %s133
    %s135 = sadd.s32 0, 0
    %p136 = scmp.lt.s32.totalorder %s135, 0
    %s137 = scalar_select %p136, %s135, 0
    %s138 = smul.u32 2, %s137
    %p139 = scmp.eq.s32.totalorder 0, 0
    // Predicated region
    $region42: #{tpu_custom_call.1} parent=1 // pred_check
      %p140 = pneg %p139
    $region43: #{tpu_custom_call.1} parent=1 // pred_check_branch
      %142 = sbr.rel (%p140) target = $region45
    $region44: #{tpu_custom_call.1} parent=1 // pred_region
      %143 = vst [vmem:[#allocation11] sm:$0xff] 0.0
      %144 = vst [vmem:[#allocation11 + $0x8] sm:$0xff] 0.0
      %145 = vst [vmem:[#allocation11 + $0x10] sm:$0xff] 0.0
      %146 = vst [vmem:[#allocation11 + $0x18] sm:$0xff] 0.0
    $region45: #{tpu_custom_call.1} parent=1 // pred_fallthru
      _
    %v147 = vld [vmem:[#allocation2] sm:$0xff]
    %v148 = vld [vmem:[#allocation2 + $0x8] sm:$0xff]
    %v149 = vld [vmem:[#allocation5] sm:$0xff]
    %v150 = vld [vmem:[#allocation5 + $0x8] sm:$0xff]
    %v151 = vld [vmem:[#allocation7] sm:$0xff]
    %v152 = vld [vmem:[#allocation7 + $0x8] sm:$0xff]
    %v153 = vld [vmem:[#allocation8] sm:$0xff]
    %v154 = vld [vmem:[#allocation8 + $0x8] sm:$0xff]
    %v155 = vsub.f32 0.0, %v149
    %v156 = vsub.f32 0.0, %v150
    %v157 = vmul.f32 %v155, 1.442695
    %v158 = vpow.pop %v157
    %v159 = vmul.f32 %v156, 1.442695
    %v160 = vpow.pop %v159
    %v161 = vsub.f32 %v147, %v151
    %v162 = vsub.f32 %v148, %v152
    %v163 = vand.u32 2147483647, %v161
    %v164 = vand.u32 2147483647, %v162
    %v165 = vmul.f32 %v158, %v163
    %v166 = vmul.f32 %v160, %v164
    %v167 = vadd.f32 %v165, %v149
    %v168 = vadd.f32 %v166, %v150
    %v169 = vld [vmem:[#allocation10] sm:$0xff]
    %v170 = vld [vmem:[#allocation10 + $0x8] sm:$0xff]
    %v171 = vmul.f32 %v153, %v169
    %v172 = vmul.f32 %v154, %v170
    %v173 = vsub.f32 %v153, %v171
    %v174 = vsub.f32 %v154, %v172
    %v175 = vmul.f32 %v171, %v167
    %v176 = vmul.f32 %v172, %v168
    %v177 = vmul.f32 %v173, %v149
    %v178 = vmul.f32 %v174, %v150
    %vm179 = vcmp.lt.f32.partialorder %v153, 0.0
    %vm180 = vcmp.lt.f32.partialorder %v154, 0.0
    %v181 = vceil.f32 %v153
    %v182 = vceil.f32 %v154
    %v183 = vfloor.f32 %v153
    %v184 = vfloor.f32 %v154
    %v185 = vsel %vm179, %v181, %v183
    %v186 = vsel %vm180, %v182, %v184
    %v187 = vld [vmem:[#allocation11] sm:$0xff]
    %v188 = vadd.f32 %v175, %v176
    %v189 = vadd.f32 %v187, %v188
    %190 = vst [vmem:[#allocation11] sm:$0xff] %v189
    %s191 = scalar_lea.vmem [#allocation11], 8
    %v192 = vld [vmem:[%s191] sm:$0xff]
    %v193 = vadd.f32 %v177, %v178
    %v194 = vadd.f32 %v192, %v193
    %195 = vst [vmem:[%s191] sm:$0xff] %v194
    %s196 = scalar_lea.vmem [#allocation11], 16
    %v197 = vld [vmem:[%s196] sm:$0xff]
    %v198 = vadd.f32 %v169, %v170
    %v199 = vadd.f32 %v197, %v198
    %200 = vst [vmem:[%s196] sm:$0xff] %v199
    %s201 = scalar_lea.vmem [#allocation11], 24
    %v202 = vld [vmem:[%s201] sm:$0xff]
    %v203 = vadd.f32 %v185, %v186
    %v204 = vadd.f32 %v202, %v203
    %205 = vst [vmem:[%s201] sm:$0xff] %v204
    // Predicated region
    $region46: #{tpu_custom_call.1} parent=1 // pred_check
      _
    $region47: #{tpu_custom_call.1} parent=1 // pred_check_branch
      %207 = sbr.rel (0) target = $region49
    $region48: #{tpu_custom_call.1} parent=1 // pred_region
      %s209 = ssub.s32 512, 512
      %210 = vsyncadd [#allocation4], %s209
      %s211 = sshll.u32 [#allocation11], 4
      %s212 = int_to_ptr.vmem [resolvable:$true] %s211
      %217 = dma.vmem_to_hbm [thread:$0]  %s212, 512, %s5, [#allocation4], 128, 128, 8
    $region49: #{tpu_custom_call.1} parent=1 // pred_fallthru
      _
    // Predicated region
    $region50: #{tpu_custom_call.1} parent=1 // pred_check
      _
    $region51: #{tpu_custom_call.1} parent=1 // pred_check_branch
      %219 = sbr.rel (0) target = $region53
    $region52: #{tpu_custom_call.1} parent=1 // pred_region
      %220 = dma.done [#allocation4], 512
    $region53: #{tpu_custom_call.1} parent=1 // pred_fallthru
      _
    %221 = vsyncpa [#allocation3], 1
    %222 = vsyncpa [#allocation6], 1
    %223 = vsyncpa [#allocation9], 1
    %224 = vsyncpa [#allocation4], 1

</llo_original>
